<compile_context>
chip_gen: v5e
topology: v5e:2x2
jax: 0.10.0
libtpu: 0.0.40
codegen_flags: <defaults>
</compile_context>

<pallas_src>
import functools

import jax
import jax.numpy as jnp
from jax.experimental import pallas as pl
from jax.experimental.pallas import tpu as pltpu


def _round_up(n, m):
    return ((n + m - 1) // m) * m


def mlp2_kernel(x_ref, w0_ref, b0_ref, w1_ref, b1_ref, w2_ref, b2_ref, o_ref):
    # layer 0: fc -> (dropout: identity in eval) -> relu
    h = jnp.dot(x_ref[...], w0_ref[...], preferred_element_type=jnp.float32)
    h = jnp.maximum(h + b0_ref[...], 0.0)
    # layer 1: fc1 -> (dropout: identity) -> relu
    h = jnp.dot(h.astype(w1_ref.dtype), w1_ref[...],
                preferred_element_type=jnp.float32)
    h = jnp.maximum(h + b1_ref[...], 0.0)
    # layer 2: fc2 (logits, no activation)
    o = jnp.dot(h.astype(w2_ref.dtype), w2_ref[...],
                preferred_element_type=jnp.float32)
    o_ref[...] = (o + b2_ref[...]).astype(o_ref.dtype)


def prepare_params(params, *, matmul_dtype=jnp.bfloat16):
    """One-time weight preprocessing, hoisted out of the per-call path.

    params["wN"]: (out, in) PyTorch convention, params["bN"]: (out,).
    Returns padded/pre-transposed device arrays + static metadata.
    """
    w0, b0 = params["w0"], params["b0"]
    w1, b1 = params["w1"], params["b1"]
    w2, b2 = params["w2"], params["b2"]

    F_in, H, Fc, C = w0.shape[1], w0.shape[0], w1.shape[0], w2.shape[0]
    Fp, Hp, Fcp, Cp = (_round_up(d, 128) for d in (F_in, H, Fc, C))

    def pad2(a, rows, cols):
        return jnp.pad(a, ((0, rows - a.shape[0]), (0, cols - a.shape[1])))

    prepped = {
        "w0t": pad2(w0.T, Fp, Hp).astype(matmul_dtype),
        "b0": pad2(b0.astype(jnp.float32).reshape(1, -1), 1, Hp),
        "w1t": pad2(w1.T, Hp, Fcp).astype(matmul_dtype),
        "b1": pad2(b1.astype(jnp.float32).reshape(1, -1), 1, Fcp),
        "w2t": pad2(w2.T, Fcp, Cp).astype(matmul_dtype),
        "b2": pad2(b2.astype(jnp.float32).reshape(1, -1), 1, Cp),
    }
    meta = {"n_classes": int(C)}
    return prepped, meta


def _vmem_capacity_bytes():
    """Per-TensorCore VMEM (v5e/v6e: 128 MiB, v7x: 64 MiB)."""
    try:
        return int(pltpu.get_tpu_info().vmem_capacity_bytes)
    except Exception:
        return 64 * 1024 * 1024  # conservative default (v7x per-TC)


@functools.partial(
    jax.jit,
    static_argnames=("n_classes", "single_buffer_weights", "out_dtype"))
def _forward_impl(x, w0t, b0, w1t, b1, w2t, b2, *, n_classes,
                  single_buffer_weights=True, out_dtype=jnp.float32):
    B, F_in = x.shape
    Fp, Hp = w0t.shape
    Fcp, Cp = w2t.shape
    matmul_dtype = w0t.dtype
    isz = jnp.dtype(matmul_dtype).itemsize
    osz = jnp.dtype(out_dtype).itemsize

    # ---- static VMEM accounting (shapes are static inside jit) ----
    wbuf = 1 if single_buffer_weights else 2
    weight_bytes = wbuf * isz * (Fp * Hp + Hp * Fcp + Fcp * Cp)
    weight_bytes += wbuf * 4 * (Hp + Fcp + Cp)          # f32 biases
    vmem_cap = _vmem_capacity_bytes()

    def tile_footprint(tb):
        return (weight_bytes
                + 2 * tb * Fp * isz        # streamed x block (double-buffered)
                + 2 * tb * Cp * osz        # streamed out block (double-buffered)
                + tb * (Hp + Fcp + Cp) * 4  # f32 activations
                + tb * (Hp + Fcp) * isz)    # bf16 recasts feeding the MXU

    # ---- batch tile: biggest that fits ~60% of per-core VMEM ----
    if B < 256:
        # bf16 vregs pack (16, 128) sublanes: keep tiny-batch tiles 16-aligned.
        TB = _round_up(max(B, 16), 16)
    else:
        budget = int(0.60 * vmem_cap)
        TB = 256
        for cand in (1024, 512, 256):  # v5e/v6e take 512+; v7x stays smaller
            if tile_footprint(cand) <= budget:
                TB = cand
                break
        # 2-TC parts (v7x): prefer an even grid-step count so the "parallel"
        # batch axis splits evenly across TensorCores.
        steps = pl.cdiv(B, TB)
        if steps > 1 and steps % 2 == 1 and TB > 256:
            TB //= 2

    Bp = _round_up(B, TB)

    # Explicit scoped-VMEM limit from the real footprint (+~30% headroom),
    # capped below physical per-core capacity.
    vmem_limit = min(int(0.85 * vmem_cap),
                     max(int(1.3 * tile_footprint(TB)), 32 * 1024 * 1024))

    # ---- lane-dense input: cast to bf16 BEFORE padding; skip pad if aligned
    xc = x.astype(matmul_dtype)
    if Bp != B or Fp != F_in:
        xc = jnp.pad(xc, ((0, Bp - B), (0, Fp - F_in)))

    def resident(a):
        kwargs = {}
        if single_buffer_weights:
            # Constant index_map => double-buffering is pure VMEM waste.
            kwargs["pipeline_mode"] = pl.Buffered(1)
        return pl.BlockSpec(a.shape, lambda i: (0,) * a.ndim, **kwargs)

    out = pl.pallas_call(
        mlp2_kernel,
        out_shape=jax.ShapeDtypeStruct((Bp, Cp), out_dtype),
        grid=(Bp // TB,),
        in_specs=[
            pl.BlockSpec((TB, Fp), lambda i: (i, 0)),  # x: streamed over batch
            resident(w0t), resident(b0),               # weights/biases: pinned
            resident(w1t), resident(b1),
            resident(w2t), resident(b2),
        ],
        out_specs=pl.BlockSpec((TB, Cp), lambda i: (i, 0)),
        compiler_params=pltpu.CompilerParams(
            dimension_semantics=("parallel",),
            vmem_limit_bytes=vmem_limit),
    )(xc, w0t, b0, w1t, b1, w2t, b2)

    # Padded logit columns are exactly zero (zero-padded w2t/b2); padded batch
    # rows are garbage (relu(bias)) and must be dropped.  Both sliced here,
    # inside the jit, so XLA fuses the slice with the kernel epilogue.
    return out[:B, :n_classes]


def mlp2_forward(x, prepped, meta, *, single_buffer_weights=True,
                 out_dtype=jnp.float32):
    return _forward_impl(
        x, prepped["w0t"], prepped["b0"], prepped["w1t"], prepped["b1"],
        prepped["w2t"], prepped["b2"], n_classes=meta["n_classes"],
        single_buffer_weights=single_buffer_weights, out_dtype=out_dtype)


def init_params(key, input_feature_size, hidden_size, fc_dim, n_classes):
    """Deterministic synthetic init matching nn.Linear parameter shapes."""
    ks = jax.random.split(key, 6)

    def linear(kw, kb, fan_out, fan_in):
        bound = 1.0 / jnp.sqrt(fan_in)
        w = jax.random.uniform(kw, (fan_out, fan_in), jnp.float32, -bound, bound)
        b = jax.random.uniform(kb, (fan_out,), jnp.float32, -bound, bound)
        return w, b

    w0, b0 = linear(ks[0], ks[1], hidden_size, input_feature_size)
    w1, b1 = linear(ks[2], ks[3], fc_dim, hidden_size)
    w2, b2 = linear(ks[4], ks[5], n_classes, fc_dim)
    return {"w0": w0, "b0": b0, "w1": w1, "b1": b1, "w2": w2, "b2": b2}


def ref_forward(x, params, matmul_dtype=jnp.bfloat16):
    """Plain-JAX reference using the same bf16 matmul operands / f32 accum."""
    c = lambda a: a.astype(matmul_dtype)
    h = jnp.dot(c(x), c(params["w0"].T), preferred_element_type=jnp.float32)
    h = jnp.maximum(h + params["b0"][None, :], 0.0)
    h = jnp.dot(c(h), c(params["w1"].T), preferred_element_type=jnp.float32)
    h = jnp.maximum(h + params["b1"][None, :], 0.0)
    o = jnp.dot(c(h), c(params["w2"].T), preferred_element_type=jnp.float32)
    return o + params["b2"][None, :]


if __name__ == "__main__":
    # Small shapes consistent with the module's forward.
    batch = 8
    input_feature_size = 32
    hidden_size = 64
    fc_dim = 32
    n_classes = 16

    key = jax.random.PRNGKey(0)
    k_x, k_p = jax.random.split(key)
    x = jax.random.normal(k_x, (batch, input_feature_size), jnp.float32)
    params = init_params(k_p, input_feature_size, hidden_size, fc_dim, n_classes)

    # One-time weight prep (hoisted out of the per-call, jitted path).
    prepped, meta = prepare_params(params)

    try:
        out = mlp2_forward(x, prepped, meta)
        jax.block_until_ready(out)
    except Exception:
        # This jax build rejected single-buffered resident weights
        # (pl.Buffered(1)); fall back to default double-buffering.
        out = mlp2_forward(x, prepped, meta, single_buffer_weights=False)
        jax.block_until_ready(out)

    ref = ref_forward(x, params)
    assert out.shape == (batch, n_classes)
    # Precision contract: matmul operands are bf16 with f32 accumulation on
    # both sides of this comparison.
    assert jnp.allclose(out, ref, atol=1e-3, rtol=1e-3), (
        float(jnp.max(jnp.abs(out - ref))))

    print("KERNEL_OK")
</pallas_src>

<mosaic_0001>
module attributes {stable_mosaic.version = 11 : i64} {
  func.func @mlp2_kernel(%arg0: i32, %arg1: memref<16x128xbf16, #tpu.memory_space<vmem>>, %arg2: memref<128x128xbf16, #tpu.memory_space<vmem>>, %arg3: memref<1x128xf32, #tpu.memory_space<vmem>>, %arg4: memref<128x128xbf16, #tpu.memory_space<vmem>>, %arg5: memref<1x128xf32, #tpu.memory_space<vmem>>, %arg6: memref<128x128xbf16, #tpu.memory_space<vmem>>, %arg7: memref<1x128xf32, #tpu.memory_space<vmem>>, %arg8: memref<16x128xf32, #tpu.memory_space<vmem>>) attributes {dimension_semantics = [#tpu.dimension_semantics<parallel>], iteration_bounds = array<i64: 1>, scalar_prefetch = 0 : i64, scratch_operands = 0 : i64, tpu.core_type = #tpu.core_type<tc>, window_params = [{transform_indices = @transform_0, window_bounds = array<i64: 16, 128>}, {pipeline_mode = #tpu.pipeline_mode<synchronous>, transform_indices = @transform_1, window_bounds = array<i64: 128, 128>}, {pipeline_mode = #tpu.pipeline_mode<synchronous>, transform_indices = @transform_2, window_bounds = array<i64: 1, 128>}, {pipeline_mode = #tpu.pipeline_mode<synchronous>, transform_indices = @transform_3, window_bounds = array<i64: 128, 128>}, {pipeline_mode = #tpu.pipeline_mode<synchronous>, transform_indices = @transform_4, window_bounds = array<i64: 1, 128>}, {pipeline_mode = #tpu.pipeline_mode<synchronous>, transform_indices = @transform_5, window_bounds = array<i64: 128, 128>}, {pipeline_mode = #tpu.pipeline_mode<synchronous>, transform_indices = @transform_6, window_bounds = array<i64: 1, 128>}, {transform_indices = @transform_7, window_bounds = array<i64: 16, 128>}]} {
    %c0 = arith.constant 0 : index
    %c0_0 = arith.constant 0 : index
    %0 = vector.load %arg1[%c0, %c0_0] : memref<16x128xbf16, #tpu.memory_space<vmem>>, vector<16x128xbf16>
    %c0_1 = arith.constant 0 : index
    %c0_2 = arith.constant 0 : index
    %1 = vector.load %arg2[%c0_1, %c0_2] : memref<128x128xbf16, #tpu.memory_space<vmem>>, vector<128x128xbf16>
    %cst = arith.constant dense<0.000000e+00> : vector<16x128xf32>
    %2 = tpu.matmul %0, %1, %cst {dimension_numbers = #tpu.dot_dimension_numbers<[1], [0], [0], [1], [0, 0, 1, 1], [], []>} : vector<16x128xbf16>, vector<128x128xbf16>, vector<16x128xf32> -> vector<16x128xf32>
    %c0_3 = arith.constant 0 : index
    %c0_4 = arith.constant 0 : index
    %3 = vector.load %arg3[%c0_3, %c0_4] : memref<1x128xf32, #tpu.memory_space<vmem>>, vector<1x128xf32>
    %4 = vector.broadcast %3 : vector<1x128xf32> to vector<16x128xf32>
    %5 = arith.addf %2, %4 : vector<16x128xf32>
    %cst_5 = arith.constant 0.000000e+00 : f32
    %6 = vector.broadcast %cst_5 : f32 to vector<16x128xf32>
    %7 = arith.maximumf %5, %6 : vector<16x128xf32>
    %8 = arith.truncf %7 : vector<16x128xf32> to vector<16x128xbf16>
    %c0_6 = arith.constant 0 : index
    %c0_7 = arith.constant 0 : index
    %9 = vector.load %arg4[%c0_6, %c0_7] : memref<128x128xbf16, #tpu.memory_space<vmem>>, vector<128x128xbf16>
    %cst_8 = arith.constant dense<0.000000e+00> : vector<16x128xf32>
    %10 = tpu.matmul %8, %9, %cst_8 {dimension_numbers = #tpu.dot_dimension_numbers<[1], [0], [0], [1], [0, 0, 1, 1], [], []>} : vector<16x128xbf16>, vector<128x128xbf16>, vector<16x128xf32> -> vector<16x128xf32>
    %c0_9 = arith.constant 0 : index
    %c0_10 = arith.constant 0 : index
    %11 = vector.load %arg5[%c0_9, %c0_10] : memref<1x128xf32, #tpu.memory_space<vmem>>, vector<1x128xf32>
    %12 = vector.broadcast %11 : vector<1x128xf32> to vector<16x128xf32>
    %13 = arith.addf %10, %12 : vector<16x128xf32>
    %cst_11 = arith.constant 0.000000e+00 : f32
    %14 = vector.broadcast %cst_11 : f32 to vector<16x128xf32>
    %15 = arith.maximumf %13, %14 : vector<16x128xf32>
    %16 = arith.truncf %15 : vector<16x128xf32> to vector<16x128xbf16>
    %c0_12 = arith.constant 0 : index
    %c0_13 = arith.constant 0 : index
    %17 = vector.load %arg6[%c0_12, %c0_13] : memref<128x128xbf16, #tpu.memory_space<vmem>>, vector<128x128xbf16>
    %cst_14 = arith.constant dense<0.000000e+00> : vector<16x128xf32>
    %18 = tpu.matmul %16, %17, %cst_14 {dimension_numbers = #tpu.dot_dimension_numbers<[1], [0], [0], [1], [0, 0, 1, 1], [], []>} : vector<16x128xbf16>, vector<128x128xbf16>, vector<16x128xf32> -> vector<16x128xf32>
    %c0_15 = arith.constant 0 : index
    %c0_16 = arith.constant 0 : index
    %19 = vector.load %arg7[%c0_15, %c0_16] : memref<1x128xf32, #tpu.memory_space<vmem>>, vector<1x128xf32>
    %20 = vector.broadcast %19 : vector<1x128xf32> to vector<16x128xf32>
    %21 = arith.addf %18, %20 : vector<16x128xf32>
    %c0_17 = arith.constant 0 : index
    %c0_18 = arith.constant 0 : index
    %22 = vector.load %arg8[%c0_17, %c0_18] : memref<16x128xf32, #tpu.memory_space<vmem>>, vector<16x128xf32>
    tpu.vector_store %arg8[%c0_17, %c0_18], %21 {strides = array<i32>} : memref<16x128xf32, #tpu.memory_space<vmem>>, vector<16x128xf32>,
    return
  }
  func.func @transform_0(%arg0: i32) -> (i32, i32) {
    %c0_i32 = arith.constant 0 : i32
    %c0_i32_0 = arith.constant 0 : i32
    return %arg0, %c0_i32 : i32, i32
  }
  func.func @transform_1(%arg0: i32) -> (i32, i32) {
    %c0_i32 = arith.constant 0 : i32
    %c0_i32_0 = arith.constant 0 : i32
    %c0_i32_1 = arith.constant 0 : i32
    return %c0_i32, %c0_i32_0 : i32, i32
  }
  func.func @transform_2(%arg0: i32) -> (i32, i32) {
    %c0_i32 = arith.constant 0 : i32
    %c0_i32_0 = arith.constant 0 : i32
    %c0_i32_1 = arith.constant 0 : i32
    return %c0_i32, %c0_i32_0 : i32, i32
  }
  func.func @transform_3(%arg0: i32) -> (i32, i32) {
    %c0_i32 = arith.constant 0 : i32
    %c0_i32_0 = arith.constant 0 : i32
    %c0_i32_1 = arith.constant 0 : i32
    return %c0_i32, %c0_i32_0 : i32, i32
  }
  func.func @transform_4(%arg0: i32) -> (i32, i32) {
    %c0_i32 = arith.constant 0 : i32
    %c0_i32_0 = arith.constant 0 : i32
    %c0_i32_1 = arith.constant 0 : i32
    return %c0_i32, %c0_i32_0 : i32, i32
  }
  func.func @transform_5(%arg0: i32) -> (i32, i32) {
    %c0_i32 = arith.constant 0 : i32
    %c0_i32_0 = arith.constant 0 : i32
    %c0_i32_1 = arith.constant 0 : i32
    return %c0_i32, %c0_i32_0 : i32, i32
  }
  func.func @transform_6(%arg0: i32) -> (i32, i32) {
    %c0_i32 = arith.constant 0 : i32
    %c0_i32_0 = arith.constant 0 : i32
    %c0_i32_1 = arith.constant 0 : i32
    return %c0_i32, %c0_i32_0 : i32, i32
  }
  func.func @transform_7(%arg0: i32) -> (i32, i32) {
    %c0_i32 = arith.constant 0 : i32
    %c0_i32_0 = arith.constant 0 : i32
    return %arg0, %c0_i32 : i32, i32
  }
}

module attributes {stable_mosaic.version = 11 : i64} {
  func.func @mlp2_kernel(%arg0: i32, %arg1: memref<16x128xbf16, #tpu.memory_space<vmem>>, %arg2: memref<128x128xbf16, #tpu.memory_space<vmem>>, %arg3: memref<1x128xf32, #tpu.memory_space<vmem>>, %arg4: memref<128x128xbf16, #tpu.memory_space<vmem>>, %arg5: memref<1x128xf32, #tpu.memory_space<vmem>>, %arg6: memref<128x128xbf16, #tpu.memory_space<vmem>>, %arg7: memref<1x128xf32, #tpu.memory_space<vmem>>, %arg8: memref<16x128xf32, #tpu.memory_space<vmem>>) attributes {dimension_semantics = [#tpu.dimension_semantics<parallel>], iteration_bounds = array<i64: 1>, scalar_prefetch = 0 : i64, scratch_operands = 0 : i64, tpu.core_type = #tpu.core_type<tc>, window_params = [{transform_indices = @transform_0, window_bounds = array<i64: 16, 128>}, {pipeline_mode = #tpu.pipeline_mode<synchronous>, transform_indices = @transform_1, window_bounds = array<i64: 128, 128>}, {pipeline_mode = #tpu.pipeline_mode<synchronous>, transform_indices = @transform_2, window_bounds = array<i64: 1, 128>}, {pipeline_mode = #tpu.pipeline_mode<synchronous>, transform_indices = @transform_3, window_bounds = array<i64: 128, 128>}, {pipeline_mode = #tpu.pipeline_mode<synchronous>, transform_indices = @transform_4, window_bounds = array<i64: 1, 128>}, {pipeline_mode = #tpu.pipeline_mode<synchronous>, transform_indices = @transform_5, window_bounds = array<i64: 128, 128>}, {pipeline_mode = #tpu.pipeline_mode<synchronous>, transform_indices = @transform_6, window_bounds = array<i64: 1, 128>}, {transform_indices = @transform_7, window_bounds = array<i64: 16, 128>}]} {
    %c0 = arith.constant 0 : index
    %c0_0 = arith.constant 0 : index
    %0 = vector.load %arg1[%c0, %c0_0] : memref<16x128xbf16, #tpu.memory_space<vmem>>, vector<16x128xbf16>
    %c0_1 = arith.constant 0 : index
    %c0_2 = arith.constant 0 : index
    %1 = vector.load %arg2[%c0_1, %c0_2] : memref<128x128xbf16, #tpu.memory_space<vmem>>, vector<128x128xbf16>
    %cst = arith.constant dense<0.000000e+00> : vector<16x128xf32>
    %2 = tpu.matmul %0, %1, %cst {dimension_numbers = #tpu.dot_dimension_numbers<[1], [0], [0], [1], [0, 0, 1, 1], [], []>} : vector<16x128xbf16>, vector<128x128xbf16>, vector<16x128xf32> -> vector<16x128xf32>
    %c0_3 = arith.constant 0 : index
    %c0_4 = arith.constant 0 : index
    %3 = vector.load %arg3[%c0_3, %c0_4] : memref<1x128xf32, #tpu.memory_space<vmem>>, vector<1x128xf32>
    %4 = vector.broadcast %3 : vector<1x128xf32> to vector<16x128xf32>
    %5 = arith.addf %2, %4 : vector<16x128xf32>
    %cst_5 = arith.constant 0.000000e+00 : f32
    %6 = vector.broadcast %cst_5 : f32 to vector<16x128xf32>
    %7 = arith.maximumf %5, %6 : vector<16x128xf32>
    %8 = arith.truncf %7 : vector<16x128xf32> to vector<16x128xbf16>
    %c0_6 = arith.constant 0 : index
    %c0_7 = arith.constant 0 : index
    %9 = vector.load %arg4[%c0_6, %c0_7] : memref<128x128xbf16, #tpu.memory_space<vmem>>, vector<128x128xbf16>
    %cst_8 = arith.constant dense<0.000000e+00> : vector<16x128xf32>
    %10 = tpu.matmul %8, %9, %cst_8 {dimension_numbers = #tpu.dot_dimension_numbers<[1], [0], [0], [1], [0, 0, 1, 1], [], []>} : vector<16x128xbf16>, vector<128x128xbf16>, vector<16x128xf32> -> vector<16x128xf32>
    %c0_9 = arith.constant 0 : index
    %c0_10 = arith.constant 0 : index
    %11 = vector.load %arg5[%c0_9, %c0_10] : memref<1x128xf32, #tpu.memory_space<vmem>>, vector<1x128xf32>
    %12 = vector.broadcast %11 : vector<1x128xf32> to vector<16x128xf32>
    %13 = arith.addf %10, %12 : vector<16x128xf32>
    %cst_11 = arith.constant 0.000000e+00 : f32
    %14 = vector.broadcast %cst_11 : f32 to vector<16x128xf32>
    %15 = arith.maximumf %13, %14 : vector<16x128xf32>
    %16 = arith.truncf %15 : vector<16x128xf32> to vector<16x128xbf16>
    %c0_12 = arith.constant 0 : index
    %c0_13 = arith.constant 0 : index
    %17 = vector.load %arg6[%c0_12, %c0_13] : memref<128x128xbf16, #tpu.memory_space<vmem>>, vector<128x128xbf16>
    %cst_14 = arith.constant dense<0.000000e+00> : vector<16x128xf32>
    %18 = tpu.matmul %16, %17, %cst_14 {dimension_numbers = #tpu.dot_dimension_numbers<[1], [0], [0], [1], [0, 0, 1, 1], [], []>} : vector<16x128xbf16>, vector<128x128xbf16>, vector<16x128xf32> -> vector<16x128xf32>
    %c0_15 = arith.constant 0 : index
    %c0_16 = arith.constant 0 : index
    %19 = vector.load %arg7[%c0_15, %c0_16] : memref<1x128xf32, #tpu.memory_space<vmem>>, vector<1x128xf32>
    %20 = vector.broadcast %19 : vector<1x128xf32> to vector<16x128xf32>
    %21 = arith.addf %18, %20 : vector<16x128xf32>
    %c0_17 = arith.constant 0 : index
    %c0_18 = arith.constant 0 : index
    %22 = vector.load %arg8[%c0_17, %c0_18] : memref<16x128xf32, #tpu.memory_space<vmem>>, vector<16x128xf32>
    tpu.vector_store %arg8[%c0_17, %c0_18], %21 {strides = array<i32>} : memref<16x128xf32, #tpu.memory_space<vmem>>, vector<16x128xf32>,
    return
  }
  func.func @transform_0(%arg0: i32) -> (i32, i32) {
    %c0_i32 = arith.constant 0 : i32
    %c0_i32_0 = arith.constant 0 : i32
    return %arg0, %c0_i32 : i32, i32
  }
  func.func @transform_1(%arg0: i32) -> (i32, i32) {
    %c0_i32 = arith.constant 0 : i32
    %c0_i32_0 = arith.constant 0 : i32
    %c0_i32_1 = arith.constant 0 : i32
    return %c0_i32, %c0_i32_0 : i32, i32
  }
  func.func @transform_2(%arg0: i32) -> (i32, i32) {
    %c0_i32 = arith.constant 0 : i32
    %c0_i32_0 = arith.constant 0 : i32
    %c0_i32_1 = arith.constant 0 : i32
    return %c0_i32, %c0_i32_0 : i32, i32
  }
  func.func @transform_3(%arg0: i32) -> (i32, i32) {
    %c0_i32 = arith.constant 0 : i32
    %c0_i32_0 = arith.constant 0 : i32
    %c0_i32_1 = arith.constant 0 : i32
    return %c0_i32, %c0_i32_0 : i32, i32
  }
  func.func @transform_4(%arg0: i32) -> (i32, i32) {
    %c0_i32 = arith.constant 0 : i32
    %c0_i32_0 = arith.constant 0 : i32
    %c0_i32_1 = arith.constant 0 : i32
    return %c0_i32, %c0_i32_0 : i32, i32
  }
  func.func @transform_5(%arg0: i32) -> (i32, i32) {
    %c0_i32 = arith.constant 0 : i32
    %c0_i32_0 = arith.constant 0 : i32
    %c0_i32_1 = arith.constant 0 : i32
    return %c0_i32, %c0_i32_0 : i32, i32
  }
  func.func @transform_6(%arg0: i32) -> (i32, i32) {
    %c0_i32 = arith.constant 0 : i32
    %c0_i32_0 = arith.constant 0 : i32
    %c0_i32_1 = arith.constant 0 : i32
    return %c0_i32, %c0_i32_0 : i32, i32
  }
  func.func @transform_7(%arg0: i32) -> (i32, i32) {
    %c0_i32 = arith.constant 0 : i32
    %c0_i32_0 = arith.constant 0 : i32
    return %arg0, %c0_i32 : i32, i32
  }
}

</mosaic_0001>

<llo_original>
// kernel: _forward_impl.1
$region0: #{_forward_impl.1}
  #allocation0 [shape = 'u32[]', space=smem, size = 0x4, offset = 0x4, fixed_abs, tag = 'smem constant byte address 0x4 - core index']
  #allocation1 [shape = 'u32[72,128]{1,0:T(1,128)}', space=vmem, size = 0x9000, scoped, tag = 'internal scratch']
  %s0 = inlined_call_operand.vmem [shape: bf16[16,128], index: 0, kind: input, shape index: {}]
  %s1 = inlined_call_operand.hbm [shape: bf16[128,128], index: 1, kind: input, shape index: {}]
  %s2 = inlined_call_operand.vmem [shape: f32[1,128], index: 2, kind: input, shape index: {}]
  %s3 = inlined_call_operand.hbm [shape: bf16[128,128], index: 3, kind: input, shape index: {}]
  %s4 = inlined_call_operand.vmem [shape: f32[1,128], index: 4, kind: input, shape index: {}]
  %s5 = inlined_call_operand.hbm [shape: bf16[128,128], index: 5, kind: input, shape index: {}]
  %s6 = inlined_call_operand.vmem [shape: f32[1,128], index: 6, kind: input, shape index: {}]
  %s7 = inlined_call_operand.vmem [shape: f32[16,128], index: 7, kind: output, shape index: {}]
  %s8 = sld [smem:[#allocation0]]
  $region50: #{_forward_impl.1} parent=0
    _
  %s10 = ssub.s32 1, %s8
  %s11 = scalar_select 0, %s10, %s8
  $region1: #{_forward_impl.1} parent=0
    #allocation2 [shape = 'u8[32768]{0}', space=vmem, size = 0x8000, scoped, tag = 'input window, operand 1, single buffered']
    #allocation3 [shape = 's32[1]{0}', space=sflag, size = 0x4, scoped, tag = 'scoped memory for _forward_impl.1']
    #allocation4 [shape = 'u8[32768]{0}', space=vmem, size = 0x8000, scoped, tag = 'input window, operand 3, single buffered']
    #allocation5 [shape = 's32[1]{0}', space=sflag, size = 0x4, scoped, tag = 'scoped memory for _forward_impl.1']
    #allocation6 [shape = 'u8[32768]{0}', space=vmem, size = 0x8000, scoped, tag = 'input window, operand 5, single buffered']
    %12 = vsyncpa [#allocation3], 0
    %13 = vsyncpa [#allocation5], 0
    // Predicated region
    $region2: #{_forward_impl.1} parent=1 // pred_check
      _
    $region3: #{_forward_impl.1} parent=1 // pred_check_branch
      %15 = sbr.rel (0) target = $region5
    $region4: #{_forward_impl.1} parent=1 // pred_region
      _
    $region5: #{_forward_impl.1} parent=1 // pred_fallthru
      _
    // Predicated region
    $region6: #{_forward_impl.1} parent=1 // pred_check
      _
    $region7: #{_forward_impl.1} parent=1 // pred_check_branch
      %17 = sbr.rel (0) target = $region9
    $region8: #{_forward_impl.1} parent=1 // pred_region
      %19 = vsyncadd [#allocation3], 0
      %s20 = sshll.u32 %s1, 4
      %s21 = int_to_ptr.hbm [resolvable:$true] %s20
      %s22 = sshll.u32 [#allocation2], 4
      %s23 = int_to_ptr.vmem [resolvable:$true] %s22
      %28 = dma.hbm_to_vmem [thread:$0]  %s21, 1024, %s23, [#allocation3], 64, 64, 4
    $region9: #{_forward_impl.1} parent=1 // pred_fallthru
      _
    // Predicated region
    $region10: #{_forward_impl.1} parent=1 // pred_check
      _
    $region11: #{_forward_impl.1} parent=1 // pred_check_branch
      %30 = sbr.rel (0) target = $region13
    $region12: #{_forward_impl.1} parent=1 // pred_region
      _
    $region13: #{_forward_impl.1} parent=1 // pred_fallthru
      _
    // Predicated region
    $region14: #{_forward_impl.1} parent=1 // pred_check
      _
    $region15: #{_forward_impl.1} parent=1 // pred_check_branch
      %32 = sbr.rel (0) target = $region17
    $region16: #{_forward_impl.1} parent=1 // pred_region
      %34 = vsyncadd [#allocation5], 0
      %s35 = sshll.u32 %s3, 4
      %s36 = int_to_ptr.hbm [resolvable:$true] %s35
      %s37 = sshll.u32 [#allocation4], 4
      %s38 = int_to_ptr.vmem [resolvable:$true] %s37
      %43 = dma.hbm_to_vmem [thread:$0]  %s36, 1024, %s38, [#allocation5], 64, 64, 4
    $region17: #{_forward_impl.1} parent=1 // pred_fallthru
      _
    // Predicated region
    $region18: #{_forward_impl.1} parent=1 // pred_check
      _
    $region19: #{_forward_impl.1} parent=1 // pred_check_branch
      %45 = sbr.rel (0) target = $region21
    $region20: #{_forward_impl.1} parent=1 // pred_region
      _
    $region21: #{_forward_impl.1} parent=1 // pred_fallthru
      _
    // Predicated region
    $region22: #{_forward_impl.1} parent=1 // pred_check
      _
    $region23: #{_forward_impl.1} parent=1 // pred_check_branch
      %47 = sbr.rel (0) target = $region25
    $region24: #{_forward_impl.1} parent=1 // pred_region
      %49 = vsyncadd [#allocation5], 0
      %s50 = sshll.u32 %s5, 4
      %s51 = int_to_ptr.hbm [resolvable:$true] %s50
      %s52 = sshll.u32 [#allocation6], 4
      %s53 = int_to_ptr.vmem [resolvable:$true] %s52
      %58 = dma.hbm_to_vmem [thread:$0]  %s51, 1024, %s53, [#allocation5], 64, 64, 4
    $region25: #{_forward_impl.1} parent=1 // pred_fallthru
      _
    // Predicated region
    $region26: #{_forward_impl.1} parent=1 // pred_check
      _
    $region27: #{_forward_impl.1} parent=1 // pred_check_branch
      %60 = sbr.rel (0) target = $region29
    $region28: #{_forward_impl.1} parent=1 // pred_region
      _
    $region29: #{_forward_impl.1} parent=1 // pred_fallthru
      _
    // Predicated region
    $region30: #{_forward_impl.1} parent=1 // pred_check
      _
    $region31: #{_forward_impl.1} parent=1 // pred_check_branch
      %62 = sbr.rel (0) target = $region33
    $region32: #{_forward_impl.1} parent=1 // pred_region
      %64 = dma.done [#allocation3], 1024
    $region33: #{_forward_impl.1} parent=1 // pred_fallthru
      _
    // Predicated region
    $region34: #{_forward_impl.1} parent=1 // pred_check
      _
    $region35: #{_forward_impl.1} parent=1 // pred_check_branch
      %66 = sbr.rel (0) target = $region37
    $region36: #{_forward_impl.1} parent=1 // pred_region
      %68 = dma.done [#allocation5], 1024
    $region37: #{_forward_impl.1} parent=1 // pred_fallthru
      _
    // Predicated region
    $region38: #{_forward_impl.1} parent=1 // pred_check
      _
    $region39: #{_forward_impl.1} parent=1 // pred_check_branch
      %70 = sbr.rel (0) target = $region41
    $region40: #{_forward_impl.1} parent=1 // pred_region
      %72 = dma.done [#allocation5], 1024
    $region41: #{_forward_impl.1} parent=1 // pred_fallthru
      _
    %v73 = vld [vmem:[%s0] sm:$0xf]
    %v74 = vld [vmem:[%s0 + $0x4] sm:$0xf]
    %v75 = vld [vmem:[#allocation2] sm:$0xf]
    %v76 = vld [vmem:[#allocation2 + $0x4] sm:$0xf]
    %v77 = vld [vmem:[#allocation2 + $0x8] sm:$0xf]
    %v78 = vld [vmem:[#allocation2 + $0xc] sm:$0xf]
    %v79 = vld [vmem:[#allocation2 + $0x10] sm:$0xf]
    %v80 = vld [vmem:[#allocation2 + $0x14] sm:$0xf]
    %v81 = vld [vmem:[#allocation2 + $0x18] sm:$0xf]
    %v82 = vld [vmem:[#allocation2 + $0x1c] sm:$0xf]
    %v83 = vld [vmem:[#allocation2 + $0x20] sm:$0xf]
    %v84 = vld [vmem:[#allocation2 + $0x24] sm:$0xf]
    %v85 = vld [vmem:[#allocation2 + $0x28] sm:$0xf]
    %v86 = vld [vmem:[#allocation2 + $0x2c] sm:$0xf]
    %v87 = vld [vmem:[#allocation2 + $0x30] sm:$0xf]
    %v88 = vld [vmem:[#allocation2 + $0x34] sm:$0xf]
    %v89 = vld [vmem:[#allocation2 + $0x38] sm:$0xf]
    %v90 = vld [vmem:[#allocation2 + $0x3c] sm:$0xf]
    %v91 = vld [vmem:[%s2] sm:$0x1]
    %v93 = vperm.slane %v91, 0
    %v97 = vunpack.c.l.b16 %v73
    %v98 = vunpack.c.l.b16 %v74
    %v99 = vpack.c.b16 %v98, %v97
    %v117 = vunpack.c.l.b16 %v75
    %v118 = vunpack.c.l.b16 %v76
    %v119 = vunpack.c.l.b16 %v77
    %v120 = vunpack.c.l.b16 %v78
    %v121 = vunpack.c.l.b16 %v79
    %v122 = vunpack.c.l.b16 %v80
    %v123 = vunpack.c.l.b16 %v81
    %v124 = vunpack.c.l.b16 %v82
    %v125 = vunpack.c.l.b16 %v83
    %v126 = vunpack.c.l.b16 %v84
    %v127 = vunpack.c.l.b16 %v85
    %v128 = vunpack.c.l.b16 %v86
    %v129 = vunpack.c.l.b16 %v87
    %v130 = vunpack.c.l.b16 %v88
    %v131 = vunpack.c.l.b16 %v89
    %v132 = vunpack.c.l.b16 %v90
    %v133 = vpack.c.b16 %v118, %v117
    %v134 = vpack.c.b16 %v120, %v119
    %v135 = vpack.c.b16 %v122, %v121
    %v136 = vpack.c.b16 %v124, %v123
    %v137 = vpack.c.b16 %v126, %v125
    %v138 = vpack.c.b16 %v128, %v127
    %v139 = vpack.c.b16 %v130, %v129
    %v140 = vpack.c.b16 %v132, %v131
    %149 = vmatpush.bf16.msra.mxu0 %v140
    %150 = vmatpush.bf16.msra.mxu0 %v139
    %151 = vmatpush.bf16.msra.mxu0 %v138
    %152 = vmatpush.bf16.msra.mxu0 %v137
    %153 = vmatpush.bf16.msra.mxu0 %v136
    %154 = vmatpush.bf16.msra.mxu0 %v135
    %155 = vmatpush.bf16.msra.mxu0 %v134
    %156 = vmatpush.bf16.msra.mxu0 %v133
    %157 = vmatmul.bf16.gmra.mxu0 %v99
    %v158 = vpop.f32.mrf.mxu0
    %v159 = vadd.f32 %v93, %v158
    %v160 = vpop.f32.mrf.mxu0
    %v161 = vadd.f32 %v93, %v160
    %162 = vdwg.mxu0
    %v163 = vmax.f32 %v159, 0.0
    %v164 = vmax.f32 %v161, 0.0
    %v165 = vpack.c.bf16 %v164, %v163
    %v166 = vld [vmem:[#allocation4] sm:$0xf]
    %v167 = vld [vmem:[#allocation4 + $0x4] sm:$0xf]
    %v168 = vld [vmem:[#allocation4 + $0x8] sm:$0xf]
    %v169 = vld [vmem:[#allocation4 + $0xc] sm:$0xf]
    %v170 = vld [vmem:[#allocation4 + $0x10] sm:$0xf]
    %v171 = vld [vmem:[#allocation4 + $0x14] sm:$0xf]
    %v172 = vld [vmem:[#allocation4 + $0x18] sm:$0xf]
    %v173 = vld [vmem:[#allocation4 + $0x1c] sm:$0xf]
    %v174 = vld [vmem:[#allocation4 + $0x20] sm:$0xf]
    %v175 = vld [vmem:[#allocation4 + $0x24] sm:$0xf]
    %v176 = vld [vmem:[#allocation4 + $0x28] sm:$0xf]
    %v177 = vld [vmem:[#allocation4 + $0x2c] sm:$0xf]
    %v178 = vld [vmem:[#allocation4 + $0x30] sm:$0xf]
    %v179 = vld [vmem:[#allocation4 + $0x34] sm:$0xf]
    %v180 = vld [vmem:[#allocation4 + $0x38] sm:$0xf]
    %v181 = vld [vmem:[#allocation4 + $0x3c] sm:$0xf]
    %v182 = vld [vmem:[%s4] sm:$0x1]
    %v184 = vperm.slane %v182, 0
    %v202 = vunpack.c.l.b16 %v166
    %v203 = vunpack.c.l.b16 %v167
    %v204 = vunpack.c.l.b16 %v168
    %v205 = vunpack.c.l.b16 %v169
    %v206 = vunpack.c.l.b16 %v170
    %v207 = vunpack.c.l.b16 %v171
    %v208 = vunpack.c.l.b16 %v172
    %v209 = vunpack.c.l.b16 %v173
    %v210 = vunpack.c.l.b16 %v174
    %v211 = vunpack.c.l.b16 %v175
    %v212 = vunpack.c.l.b16 %v176
    %v213 = vunpack.c.l.b16 %v177
    %v214 = vunpack.c.l.b16 %v178
    %v215 = vunpack.c.l.b16 %v179
    %v216 = vunpack.c.l.b16 %v180
    %v217 = vunpack.c.l.b16 %v181
    %v218 = vpack.c.b16 %v203, %v202
    %v219 = vpack.c.b16 %v205, %v204
    %v220 = vpack.c.b16 %v207, %v206
    %v221 = vpack.c.b16 %v209, %v208
    %v222 = vpack.c.b16 %v211, %v210
    %v223 = vpack.c.b16 %v213, %v212
    %v224 = vpack.c.b16 %v215, %v214
    %v225 = vpack.c.b16 %v217, %v216
    %234 = vmatpush.bf16.msra.mxu0 %v225
    %235 = vmatpush.bf16.msra.mxu0 %v224
    %236 = vmatpush.bf16.msra.mxu0 %v223
    %237 = vmatpush.bf16.msra.mxu0 %v222
    %238 = vmatpush.bf16.msra.mxu0 %v221
    %239 = vmatpush.bf16.msra.mxu0 %v220
    %240 = vmatpush.bf16.msra.mxu0 %v219
    %241 = vmatpush.bf16.msra.mxu0 %v218
    %242 = vmatmul.bf16.gmra.mxu0 %v165
    %v243 = vpop.f32.mrf.mxu0
    %v244 = vadd.f32 %v184, %v243
    %v245 = vpop.f32.mrf.mxu0
    %v246 = vadd.f32 %v184, %v245
    %247 = vdwg.mxu0
    %v248 = vmax.f32 %v244, 0.0
    %v249 = vmax.f32 %v246, 0.0
    %v250 = vpack.c.bf16 %v249, %v248
    %v251 = vld [vmem:[#allocation6] sm:$0xf]
    %v252 = vld [vmem:[#allocation6 + $0x4] sm:$0xf]
    %v253 = vld [vmem:[#allocation6 + $0x8] sm:$0xf]
    %v254 = vld [vmem:[#allocation6 + $0xc] sm:$0xf]
    %v255 = vld [vmem:[#allocation6 + $0x10] sm:$0xf]
    %v256 = vld [vmem:[#allocation6 + $0x14] sm:$0xf]
    %v257 = vld [vmem:[#allocation6 + $0x18] sm:$0xf]
    %v258 = vld [vmem:[#allocation6 + $0x1c] sm:$0xf]
    %v259 = vld [vmem:[#allocation6 + $0x20] sm:$0xf]
    %v260 = vld [vmem:[#allocation6 + $0x24] sm:$0xf]
    %v261 = vld [vmem:[#allocation6 + $0x28] sm:$0xf]
    %v262 = vld [vmem:[#allocation6 + $0x2c] sm:$0xf]
    %v263 = vld [vmem:[#allocation6 + $0x30] sm:$0xf]
    %v264 = vld [vmem:[#allocation6 + $0x34] sm:$0xf]
    %v265 = vld [vmem:[#allocation6 + $0x38] sm:$0xf]
    %v266 = vld [vmem:[#allocation6 + $0x3c] sm:$0xf]
    %v267 = vld [vmem:[%s6] sm:$0x1]
    %v269 = vperm.slane %v267, 0
    %v287 = vunpack.c.l.b16 %v251
    %v288 = vunpack.c.l.b16 %v252
    %v289 = vunpack.c.l.b16 %v253
    %v290 = vunpack.c.l.b16 %v254
    %v291 = vunpack.c.l.b16 %v255
    %v292 = vunpack.c.l.b16 %v256
    %v293 = vunpack.c.l.b16 %v257
    %v294 = vunpack.c.l.b16 %v258
    %v295 = vunpack.c.l.b16 %v259
    %v296 = vunpack.c.l.b16 %v260
    %v297 = vunpack.c.l.b16 %v261
    %v298 = vunpack.c.l.b16 %v262
    %v299 = vunpack.c.l.b16 %v263
    %v300 = vunpack.c.l.b16 %v264
    %v301 = vunpack.c.l.b16 %v265
    %v302 = vunpack.c.l.b16 %v266
    %v303 = vpack.c.b16 %v288, %v287
    %v304 = vpack.c.b16 %v290, %v289
    %v305 = vpack.c.b16 %v292, %v291
    %v306 = vpack.c.b16 %v294, %v293
    %v307 = vpack.c.b16 %v296, %v295
    %v308 = vpack.c.b16 %v298, %v297
    %v309 = vpack.c.b16 %v300, %v299
    %v310 = vpack.c.b16 %v302, %v301
    %319 = vmatpush.bf16.msra.mxu0 %v310
    %320 = vmatpush.bf16.msra.mxu0 %v309
    %321 = vmatpush.bf16.msra.mxu0 %v308
    %322 = vmatpush.bf16.msra.mxu0 %v307
    %323 = vmatpush.bf16.msra.mxu0 %v306
    %324 = vmatpush.bf16.msra.mxu0 %v305
    %325 = vmatpush.bf16.msra.mxu0 %v304
    %326 = vmatpush.bf16.msra.mxu0 %v303
    %327 = vmatmul.bf16.gmra.mxu0 %v250
    %v328 = vpop.f32.mrf.mxu0
    %v329 = vadd.f32 %v269, %v328
    %v330 = vpop.f32.mrf.mxu0
    %v331 = vadd.f32 %v269, %v330
    %332 = vdwg.mxu0
    %333 = vst [vmem:[%s7] sm:$0xff] %v329
    %334 = vst [vmem:[%s7 + $0x8] sm:$0xff] %v331
    // Predicated region
    $region42: #{_forward_impl.1} parent=1 // pred_check
      _
    $region43: #{_forward_impl.1} parent=1 // pred_check_branch
      %336 = sbr.rel (0) target = $region45
    $region44: #{_forward_impl.1} parent=1 // pred_region
      _
    $region45: #{_forward_impl.1} parent=1 // pred_fallthru
      _
    // Predicated region
    $region46: #{_forward_impl.1} parent=1 // pred_check
      _
    $region47: #{_forward_impl.1} parent=1 // pred_check_branch
      %338 = sbr.rel (0) target = $region49
    $region48: #{_forward_impl.1} parent=1 // pred_region
      _
    $region49: #{_forward_impl.1} parent=1 // pred_fallthru
      _
    %339 = vsyncpa [#allocation3], 1
    %340 = vsyncpa [#allocation5], 1

// kernel: _forward_impl.1
$region0: #{_forward_impl.1}
  #allocation0 [shape = 'u32[]', space=smem, size = 0x4, offset = 0x4, fixed_abs, tag = 'smem constant byte address 0x4 - core index']
  #allocation1 [shape = 'u32[72,128]{1,0:T(1,128)}', space=vmem, size = 0x9000, scoped, tag = 'internal scratch']
  %s0 = inlined_call_operand.vmem [shape: bf16[16,128], index: 0, kind: input, shape index: {}]
  %s1 = inlined_call_operand.hbm [shape: bf16[128,128], index: 1, kind: input, shape index: {}]
  %s2 = inlined_call_operand.vmem [shape: f32[1,128], index: 2, kind: input, shape index: {}]
  %s3 = inlined_call_operand.hbm [shape: bf16[128,128], index: 3, kind: input, shape index: {}]
  %s4 = inlined_call_operand.vmem [shape: f32[1,128], index: 4, kind: input, shape index: {}]
  %s5 = inlined_call_operand.hbm [shape: bf16[128,128], index: 5, kind: input, shape index: {}]
  %s6 = inlined_call_operand.vmem [shape: f32[1,128], index: 6, kind: input, shape index: {}]
  %s7 = inlined_call_operand.vmem [shape: f32[16,128], index: 7, kind: output, shape index: {}]
  %s8 = sld [smem:[#allocation0]]
  $region50: #{_forward_impl.1} parent=0
    _
  %s10 = ssub.s32 1, %s8
  %s11 = scalar_select 0, %s10, %s8
  $region1: #{_forward_impl.1} parent=0
    #allocation2 [shape = 'u8[32768]{0}', space=vmem, size = 0x8000, scoped, tag = 'input window, operand 1, single buffered']
    #allocation3 [shape = 's32[1]{0}', space=sflag, size = 0x4, scoped, tag = 'scoped memory for _forward_impl.1']
    #allocation4 [shape = 'u8[32768]{0}', space=vmem, size = 0x8000, scoped, tag = 'input window, operand 3, single buffered']
    #allocation5 [shape = 's32[1]{0}', space=sflag, size = 0x4, scoped, tag = 'scoped memory for _forward_impl.1']
    #allocation6 [shape = 'u8[32768]{0}', space=vmem, size = 0x8000, scoped, tag = 'input window, operand 5, single buffered']
    %12 = vsyncpa [#allocation3], 0
    %13 = vsyncpa [#allocation5], 0
    // Predicated region
    $region2: #{_forward_impl.1} parent=1 // pred_check
      _
    $region3: #{_forward_impl.1} parent=1 // pred_check_branch
      %15 = sbr.rel (0) target = $region5
    $region4: #{_forward_impl.1} parent=1 // pred_region
      _
    $region5: #{_forward_impl.1} parent=1 // pred_fallthru
      _
    // Predicated region
    $region6: #{_forward_impl.1} parent=1 // pred_check
      _
    $region7: #{_forward_impl.1} parent=1 // pred_check_branch
      %17 = sbr.rel (0) target = $region9
    $region8: #{_forward_impl.1} parent=1 // pred_region
      %19 = vsyncadd [#allocation3], 0
      %s20 = sshll.u32 %s1, 4
      %s21 = int_to_ptr.hbm [resolvable:$true] %s20
      %s22 = sshll.u32 [#allocation2], 4
      %s23 = int_to_ptr.vmem [resolvable:$true] %s22
      %28 = dma.hbm_to_vmem [thread:$0]  %s21, 1024, %s23, [#allocation3], 64, 64, 4
    $region9: #{_forward_impl.1} parent=1 // pred_fallthru
      _
    // Predicated region
    $region10: #{_forward_impl.1} parent=1 // pred_check
      _
    $region11: #{_forward_impl.1} parent=1 // pred_check_branch
      %30 = sbr.rel (0) target = $region13
    $region12: #{_forward_impl.1} parent=1 // pred_region
      _
    $region13: #{_forward_impl.1} parent=1 // pred_fallthru
      _
    // Predicated region
    $region14: #{_forward_impl.1} parent=1 // pred_check
      _
    $region15: #{_forward_impl.1} parent=1 // pred_check_branch
      %32 = sbr.rel (0) target = $region17
    $region16: #{_forward_impl.1} parent=1 // pred_region
      %34 = vsyncadd [#allocation5], 0
      %s35 = sshll.u32 %s3, 4
      %s36 = int_to_ptr.hbm [resolvable:$true] %s35
      %s37 = sshll.u32 [#allocation4], 4
      %s38 = int_to_ptr.vmem [resolvable:$true] %s37
      %43 = dma.hbm_to_vmem [thread:$0]  %s36, 1024, %s38, [#allocation5], 64, 64, 4
    $region17: #{_forward_impl.1} parent=1 // pred_fallthru
      _
    // Predicated region
    $region18: #{_forward_impl.1} parent=1 // pred_check
      _
    $region19: #{_forward_impl.1} parent=1 // pred_check_branch
      %45 = sbr.rel (0) target = $region21
    $region20: #{_forward_impl.1} parent=1 // pred_region
      _
    $region21: #{_forward_impl.1} parent=1 // pred_fallthru
      _
    // Predicated region
    $region22: #{_forward_impl.1} parent=1 // pred_check
      _
    $region23: #{_forward_impl.1} parent=1 // pred_check_branch
      %47 = sbr.rel (0) target = $region25
    $region24: #{_forward_impl.1} parent=1 // pred_region
      %49 = vsyncadd [#allocation5], 0
      %s50 = sshll.u32 %s5, 4
      %s51 = int_to_ptr.hbm [resolvable:$true] %s50
      %s52 = sshll.u32 [#allocation6], 4
      %s53 = int_to_ptr.vmem [resolvable:$true] %s52
      %58 = dma.hbm_to_vmem [thread:$0]  %s51, 1024, %s53, [#allocation5], 64, 64, 4
    $region25: #{_forward_impl.1} parent=1 // pred_fallthru
      _
    // Predicated region
    $region26: #{_forward_impl.1} parent=1 // pred_check
      _
    $region27: #{_forward_impl.1} parent=1 // pred_check_branch
      %60 = sbr.rel (0) target = $region29
    $region28: #{_forward_impl.1} parent=1 // pred_region
      _
    $region29: #{_forward_impl.1} parent=1 // pred_fallthru
      _
    // Predicated region
    $region30: #{_forward_impl.1} parent=1 // pred_check
      _
    $region31: #{_forward_impl.1} parent=1 // pred_check_branch
      %62 = sbr.rel (0) target = $region33
    $region32: #{_forward_impl.1} parent=1 // pred_region
      %64 = dma.done [#allocation3], 1024
    $region33: #{_forward_impl.1} parent=1 // pred_fallthru
      _
    // Predicated region
    $region34: #{_forward_impl.1} parent=1 // pred_check
      _
    $region35: #{_forward_impl.1} parent=1 // pred_check_branch
      %66 = sbr.rel (0) target = $region37
    $region36: #{_forward_impl.1} parent=1 // pred_region
      %68 = dma.done [#allocation5], 1024
    $region37: #{_forward_impl.1} parent=1 // pred_fallthru
      _
    // Predicated region
    $region38: #{_forward_impl.1} parent=1 // pred_check
      _
    $region39: #{_forward_impl.1} parent=1 // pred_check_branch
      %70 = sbr.rel (0) target = $region41
    $region40: #{_forward_impl.1} parent=1 // pred_region
      %72 = dma.done [#allocation5], 1024
    $region41: #{_forward_impl.1} parent=1 // pred_fallthru
      _
    %v73 = vld [vmem:[%s0] sm:$0xf]
    %v74 = vld [vmem:[%s0 + $0x4] sm:$0xf]
    %v75 = vld [vmem:[#allocation2] sm:$0xf]
    %v76 = vld [vmem:[#allocation2 + $0x4] sm:$0xf]
    %v77 = vld [vmem:[#allocation2 + $0x8] sm:$0xf]
    %v78 = vld [vmem:[#allocation2 + $0xc] sm:$0xf]
    %v79 = vld [vmem:[#allocation2 + $0x10] sm:$0xf]
    %v80 = vld [vmem:[#allocation2 + $0x14] sm:$0xf]
    %v81 = vld [vmem:[#allocation2 + $0x18] sm:$0xf]
    %v82 = vld [vmem:[#allocation2 + $0x1c] sm:$0xf]
    %v83 = vld [vmem:[#allocation2 + $0x20] sm:$0xf]
    %v84 = vld [vmem:[#allocation2 + $0x24] sm:$0xf]
    %v85 = vld [vmem:[#allocation2 + $0x28] sm:$0xf]
    %v86 = vld [vmem:[#allocation2 + $0x2c] sm:$0xf]
    %v87 = vld [vmem:[#allocation2 + $0x30] sm:$0xf]
    %v88 = vld [vmem:[#allocation2 + $0x34] sm:$0xf]
    %v89 = vld [vmem:[#allocation2 + $0x38] sm:$0xf]
    %v90 = vld [vmem:[#allocation2 + $0x3c] sm:$0xf]
    %v91 = vld [vmem:[%s2] sm:$0x1]
    %v93 = vperm.slane %v91, 0
    %v97 = vunpack.c.l.b16 %v73
    %v98 = vunpack.c.l.b16 %v74
    %v99 = vpack.c.b16 %v98, %v97
    %v117 = vunpack.c.l.b16 %v75
    %v118 = vunpack.c.l.b16 %v76
    %v119 = vunpack.c.l.b16 %v77
    %v120 = vunpack.c.l.b16 %v78
    %v121 = vunpack.c.l.b16 %v79
    %v122 = vunpack.c.l.b16 %v80
    %v123 = vunpack.c.l.b16 %v81
    %v124 = vunpack.c.l.b16 %v82
    %v125 = vunpack.c.l.b16 %v83
    %v126 = vunpack.c.l.b16 %v84
    %v127 = vunpack.c.l.b16 %v85
    %v128 = vunpack.c.l.b16 %v86
    %v129 = vunpack.c.l.b16 %v87
    %v130 = vunpack.c.l.b16 %v88
    %v131 = vunpack.c.l.b16 %v89
    %v132 = vunpack.c.l.b16 %v90
    %v133 = vpack.c.b16 %v118, %v117
    %v134 = vpack.c.b16 %v120, %v119
    %v135 = vpack.c.b16 %v122, %v121
    %v136 = vpack.c.b16 %v124, %v123
    %v137 = vpack.c.b16 %v126, %v125
    %v138 = vpack.c.b16 %v128, %v127
    %v139 = vpack.c.b16 %v130, %v129
    %v140 = vpack.c.b16 %v132, %v131
    %149 = vmatpush.bf16.msra.mxu0 %v140
    %150 = vmatpush.bf16.msra.mxu0 %v139
    %151 = vmatpush.bf16.msra.mxu0 %v138
    %152 = vmatpush.bf16.msra.mxu0 %v137
    %153 = vmatpush.bf16.msra.mxu0 %v136
    %154 = vmatpush.bf16.msra.mxu0 %v135
    %155 = vmatpush.bf16.msra.mxu0 %v134
    %156 = vmatpush.bf16.msra.mxu0 %v133
    %157 = vmatmul.bf16.gmra.mxu0 %v99
    %v158 = vpop.f32.mrf.mxu0
    %v159 = vadd.f32 %v93, %v158
    %v160 = vpop.f32.mrf.mxu0
    %v161 = vadd.f32 %v93, %v160
    %162 = vdwg.mxu0
    %v163 = vmax.f32 %v159, 0.0
    %v164 = vmax.f32 %v161, 0.0
    %v165 = vpack.c.bf16 %v164, %v163
    %v166 = vld [vmem:[#allocation4] sm:$0xf]
    %v167 = vld [vmem:[#allocation4 + $0x4] sm:$0xf]
    %v168 = vld [vmem:[#allocation4 + $0x8] sm:$0xf]
    %v169 = vld [vmem:[#allocation4 + $0xc] sm:$0xf]
    %v170 = vld [vmem:[#allocation4 + $0x10] sm:$0xf]
    %v171 = vld [vmem:[#allocation4 + $0x14] sm:$0xf]
    %v172 = vld [vmem:[#allocation4 + $0x18] sm:$0xf]
    %v173 = vld [vmem:[#allocation4 + $0x1c] sm:$0xf]
    %v174 = vld [vmem:[#allocation4 + $0x20] sm:$0xf]
    %v175 = vld [vmem:[#allocation4 + $0x24] sm:$0xf]
    %v176 = vld [vmem:[#allocation4 + $0x28] sm:$0xf]
    %v177 = vld [vmem:[#allocation4 + $0x2c] sm:$0xf]
    %v178 = vld [vmem:[#allocation4 + $0x30] sm:$0xf]
    %v179 = vld [vmem:[#allocation4 + $0x34] sm:$0xf]
    %v180 = vld [vmem:[#allocation4 + $0x38] sm:$0xf]
    %v181 = vld [vmem:[#allocation4 + $0x3c] sm:$0xf]
    %v182 = vld [vmem:[%s4] sm:$0x1]
    %v184 = vperm.slane %v182, 0
    %v202 = vunpack.c.l.b16 %v166
    %v203 = vunpack.c.l.b16 %v167
    %v204 = vunpack.c.l.b16 %v168
    %v205 = vunpack.c.l.b16 %v169
    %v206 = vunpack.c.l.b16 %v170
    %v207 = vunpack.c.l.b16 %v171
    %v208 = vunpack.c.l.b16 %v172
    %v209 = vunpack.c.l.b16 %v173
    %v210 = vunpack.c.l.b16 %v174
    %v211 = vunpack.c.l.b16 %v175
    %v212 = vunpack.c.l.b16 %v176
    %v213 = vunpack.c.l.b16 %v177
    %v214 = vunpack.c.l.b16 %v178
    %v215 = vunpack.c.l.b16 %v179
    %v216 = vunpack.c.l.b16 %v180
    %v217 = vunpack.c.l.b16 %v181
    %v218 = vpack.c.b16 %v203, %v202
    %v219 = vpack.c.b16 %v205, %v204
    %v220 = vpack.c.b16 %v207, %v206
    %v221 = vpack.c.b16 %v209, %v208
    %v222 = vpack.c.b16 %v211, %v210
    %v223 = vpack.c.b16 %v213, %v212
    %v224 = vpack.c.b16 %v215, %v214
    %v225 = vpack.c.b16 %v217, %v216
    %234 = vmatpush.bf16.msra.mxu0 %v225
    %235 = vmatpush.bf16.msra.mxu0 %v224
    %236 = vmatpush.bf16.msra.mxu0 %v223
    %237 = vmatpush.bf16.msra.mxu0 %v222
    %238 = vmatpush.bf16.msra.mxu0 %v221
    %239 = vmatpush.bf16.msra.mxu0 %v220
    %240 = vmatpush.bf16.msra.mxu0 %v219
    %241 = vmatpush.bf16.msra.mxu0 %v218
    %242 = vmatmul.bf16.gmra.mxu0 %v165
    %v243 = vpop.f32.mrf.mxu0
    %v244 = vadd.f32 %v184, %v243
    %v245 = vpop.f32.mrf.mxu0
    %v246 = vadd.f32 %v184, %v245
    %247 = vdwg.mxu0
    %v248 = vmax.f32 %v244, 0.0
    %v249 = vmax.f32 %v246, 0.0
    %v250 = vpack.c.bf16 %v249, %v248
    %v251 = vld [vmem:[#allocation6] sm:$0xf]
    %v252 = vld [vmem:[#allocation6 + $0x4] sm:$0xf]
    %v253 = vld [vmem:[#allocation6 + $0x8] sm:$0xf]
    %v254 = vld [vmem:[#allocation6 + $0xc] sm:$0xf]
    %v255 = vld [vmem:[#allocation6 + $0x10] sm:$0xf]
    %v256 = vld [vmem:[#allocation6 + $0x14] sm:$0xf]
    %v257 = vld [vmem:[#allocation6 + $0x18] sm:$0xf]
    %v258 = vld [vmem:[#allocation6 + $0x1c] sm:$0xf]
    %v259 = vld [vmem:[#allocation6 + $0x20] sm:$0xf]
    %v260 = vld [vmem:[#allocation6 + $0x24] sm:$0xf]
    %v261 = vld [vmem:[#allocation6 + $0x28] sm:$0xf]
    %v262 = vld [vmem:[#allocation6 + $0x2c] sm:$0xf]
    %v263 = vld [vmem:[#allocation6 + $0x30] sm:$0xf]
    %v264 = vld [vmem:[#allocation6 + $0x34] sm:$0xf]
    %v265 = vld [vmem:[#allocation6 + $0x38] sm:$0xf]
    %v266 = vld [vmem:[#allocation6 + $0x3c] sm:$0xf]
    %v267 = vld [vmem:[%s6] sm:$0x1]
    %v269 = vperm.slane %v267, 0
    %v287 = vunpack.c.l.b16 %v251
    %v288 = vunpack.c.l.b16 %v252
    %v289 = vunpack.c.l.b16 %v253
    %v290 = vunpack.c.l.b16 %v254
    %v291 = vunpack.c.l.b16 %v255
    %v292 = vunpack.c.l.b16 %v256
    %v293 = vunpack.c.l.b16 %v257
    %v294 = vunpack.c.l.b16 %v258
    %v295 = vunpack.c.l.b16 %v259
    %v296 = vunpack.c.l.b16 %v260
    %v297 = vunpack.c.l.b16 %v261
    %v298 = vunpack.c.l.b16 %v262
    %v299 = vunpack.c.l.b16 %v263
    %v300 = vunpack.c.l.b16 %v264
    %v301 = vunpack.c.l.b16 %v265
    %v302 = vunpack.c.l.b16 %v266
    %v303 = vpack.c.b16 %v288, %v287
    %v304 = vpack.c.b16 %v290, %v289
    %v305 = vpack.c.b16 %v292, %v291
    %v306 = vpack.c.b16 %v294, %v293
    %v307 = vpack.c.b16 %v296, %v295
    %v308 = vpack.c.b16 %v298, %v297
    %v309 = vpack.c.b16 %v300, %v299
    %v310 = vpack.c.b16 %v302, %v301
    %319 = vmatpush.bf16.msra.mxu0 %v310
    %320 = vmatpush.bf16.msra.mxu0 %v309
    %321 = vmatpush.bf16.msra.mxu0 %v308
    %322 = vmatpush.bf16.msra.mxu0 %v307
    %323 = vmatpush.bf16.msra.mxu0 %v306
    %324 = vmatpush.bf16.msra.mxu0 %v305
    %325 = vmatpush.bf16.msra.mxu0 %v304
    %326 = vmatpush.bf16.msra.mxu0 %v303
    %327 = vmatmul.bf16.gmra.mxu0 %v250
    %v328 = vpop.f32.mrf.mxu0
    %v329 = vadd.f32 %v269, %v328
    %v330 = vpop.f32.mrf.mxu0
    %v331 = vadd.f32 %v269, %v330
    %332 = vdwg.mxu0
    %333 = vst [vmem:[%s7] sm:$0xff] %v329
    %334 = vst [vmem:[%s7 + $0x8] sm:$0xff] %v331
    // Predicated region
    $region42: #{_forward_impl.1} parent=1 // pred_check
      _
    $region43: #{_forward_impl.1} parent=1 // pred_check_branch
      %336 = sbr.rel (0) target = $region45
    $region44: #{_forward_impl.1} parent=1 // pred_region
      _
    $region45: #{_forward_impl.1} parent=1 // pred_fallthru
      _
    // Predicated region
    $region46: #{_forward_impl.1} parent=1 // pred_check
      _
    $region47: #{_forward_impl.1} parent=1 // pred_check_branch
      %338 = sbr.rel (0) target = $region49
    $region48: #{_forward_impl.1} parent=1 // pred_region
      _
    $region49: #{_forward_impl.1} parent=1 // pred_fallthru
      _
    %339 = vsyncpa [#allocation3], 1
    %340 = vsyncpa [#allocation5], 1

</llo_original>
